<compile_context>
chip_gen: v7x
topology: tpu7x:2x2x1
jax: 0.10.0
libtpu: 0.0.40
codegen_flags: <defaults>
</compile_context>

<pallas_src>
import functools

import jax
import jax.numpy as jnp
from jax.experimental import pallas as pl
from jax.experimental.pallas import tpu as pltpu


def _round_up(x, m):
    return ((x + m - 1) // m) * m


def _vmem_capacity_bytes():
    """Best-effort per-core VMEM capacity; conservative 64 MiB fallback."""
    try:
        info = pltpu.get_tpu_info()
        cap = getattr(info, "vmem_capacity_bytes", None)
        if cap:
            return int(cap)
    except Exception:
        pass
    return 64 * 1024 * 1024


def _gcn_stack_kernel(a_ref, x_ref, w0_ref, wr_ref, b_ref, o_ref,
                      z_ref, xw_ref, acc_ref, *, n_layers, t, a_resident):
    l = pl.program_id(0)              # layer (sequential)
    i = pl.program_id(1)              # output-row tile
    k = pl.program_id(2)              # contraction tile (innermost)
    nk = pl.num_programs(2)

    row_k = pl.multiple_of(k * t, t)
    row_i = pl.multiple_of(i * t, t)

    # ---- prologue (only at i == 0): XW[k rows] = Z_l[k rows] @ W_l --------
    # Spread across the k loop so the A-stream pipeline stays full and the
    # f32 matmul intermediate is bounded to (t, f_pad).
    @pl.when(i == 0)
    def _():
        @pl.when(l == 0)
        def _():
            xw = jnp.dot(x_ref[...], w0_ref[...],
                         preferred_element_type=jnp.float32)
            xw_ref[pl.ds(row_k, t), :] = xw.astype(jnp.bfloat16)

        @pl.when(l > 0)
        def _():
            xw = jnp.dot(z_ref[pl.ds(row_k, t), :], wr_ref[...],
                         preferred_element_type=jnp.float32)
            xw_ref[pl.ds(row_k, t), :] = xw.astype(jnp.bfloat16)

    # ---- aggregation: acc += A_hat[i, k] @ XW[k rows] ----------------------
    @pl.when(k == 0)
    def _():
        acc_ref[...] = jnp.zeros_like(acc_ref)

    if a_resident:
        # a_ref is the full resident (nk, n_pad, t) panel stack.
        a_tile = a_ref[k, pl.ds(row_i, t), :]
    else:
        # a_ref is a streamed (t, t) tile for block (k, i).
        a_tile = a_ref[...]

    acc_ref[...] += jnp.dot(a_tile, xw_ref[pl.ds(row_k, t), :],
                            preferred_element_type=jnp.float32)

    # ---- epilogue at the last k tile: bias + activation --------------------
    @pl.when(k == nk - 1)
    def _():
        zb = acc_ref[...] + b_ref[...]           # pre-activation (f32)

        @pl.when(l < n_layers - 1)               # hidden layers: ReLU -> Z
        def _():
            z_ref[pl.ds(row_i, t), :] = jnp.maximum(zb, 0.0).astype(jnp.bfloat16)

        @pl.when(l == n_layers - 1)              # last GraphConv: no activation
        def _():
            o_ref[...] = zb.astype(o_ref.dtype)


def gcn_forward(a_hat, x, params):
    """Fused GCN forward: act(A_hat @ (Z @ W_l) + b_l) per layer, one kernel."""
    n = a_hat.shape[0]
    f_in = x.shape[1]
    out_dims = [w.shape[1] for (w, _) in params]
    n_layers = len(params)

    # Separate padding for the input feature dim vs the hidden/output dims.
    f_in_pad = _round_up(f_in, 128)
    f_pad = _round_up(max(out_dims), 128)

    vmem_cap = _vmem_capacity_bytes()

    # Tile selection for the node dimension.
    if n <= 256:
        t = _round_up(max(n, 8), 16)
        n_pad = t
    else:
        # Bigger A tiles amortize per-step overhead when VMEM allows (v5e/v6e).
        t = 512 if (n >= 2048 and vmem_cap >= 96 * 1024 * 1024) else 256
        n_pad = _round_up(n, t)
    ni = n_pad // t
    nk = ni

    # ---- VMEM footprint (x2 = default double buffering of pipelined blocks).
    bf2, f4 = 2, 4
    base_bytes = (
        2 * t * f_in_pad * bf2        # X tiles
        + 2 * f_in_pad * f_pad * bf2  # W_0 (resident, constant block)
        + 2 * f_pad * f_pad * bf2     # W_l (l >= 1), one block per layer
        + 2 * 1 * f_pad * f4          # b_l blocks
        + 2 * t * f_pad * f4          # output tiles
        + n_pad * f_pad * bf2         # Z scratch (single, bf16, in-place)
        + n_pad * f_pad * bf2         # XW scratch (bf16)
        + t * f_pad * f4              # aggregation accumulator (f32)
        + 2 * t * f_pad * f4          # f32 matmul / epilogue intermediates
    )
    resident_bytes = base_bytes + 2 * n_pad * n_pad * bf2   # full A block
    streamed_bytes = base_bytes + 2 * t * t * bf2           # (t, t) A tiles

    # Residency only pays when A is re-streamed (multi-tile AND multi-layer).
    a_resident = (ni > 1 and n_layers > 1
                  and resident_bytes <= int(0.80 * vmem_cap))
    vmem_need = resident_bytes if a_resident else streamed_bytes
    vmem_limit = int(min(0.85 * vmem_cap,
                         max(1.25 * vmem_need, 32 * 1024 * 1024)))

    # ---- Zero-padded bf16 matmul operands (f32 accumulation in-kernel). ----
    a_p = jnp.zeros((n_pad, n_pad), jnp.bfloat16)
    a_p = a_p.at[:n, :n].set(a_hat.astype(jnp.bfloat16))
    # Column-panel layout (nk, n_pad, t): tile (i, k) == a_t[k, i*t:(i+1)*t, :]
    # -> contiguous DMAs when streamed, and leading-axis indexing when resident.
    a_t = a_p.reshape(n_pad, nk, t).transpose(1, 0, 2)

    x_p = jnp.zeros((n_pad, f_in_pad), jnp.bfloat16)
    x_p = x_p.at[:n, :f_in].set(x.astype(jnp.bfloat16))

    w0, b0 = params[0]
    w0_p = jnp.zeros((f_in_pad, f_pad), jnp.bfloat16)
    w0_p = w0_p.at[:f_in, :out_dims[0]].set(w0.astype(jnp.bfloat16))

    wr_p = jnp.zeros((max(n_layers - 1, 1), f_pad, f_pad), jnp.bfloat16)
    b_p = jnp.zeros((n_layers, 1, f_pad), jnp.float32)
    b_p = b_p.at[0, 0, :out_dims[0]].set(b0.astype(jnp.float32))
    for li in range(1, n_layers):
        w, b = params[li]
        fi, fo = w.shape
        wr_p = wr_p.at[li - 1, :fi, :fo].set(w.astype(jnp.bfloat16))
        b_p = b_p.at[li, 0, :fo].set(b.astype(jnp.float32))

    # ---- BlockSpecs ---------------------------------------------------------
    if a_resident:
        a_spec = pl.BlockSpec((nk, n_pad, t), lambda l, i, k: (0, 0, 0))
    else:
        a_spec = pl.BlockSpec((None, t, t), lambda l, i, k: (k, i, 0))

    def x_map(l, i, k):
        # Only layer 0's prologue (i == 0) consumes X; park on block 0 otherwise
        # so X is not re-streamed for the rest of the kernel.
        use = jnp.logical_and(l == 0, i == 0)
        return (jnp.where(use, k, 0), 0)

    def wr_map(l, i, k):
        return (jnp.maximum(l - 1, 0), 0, 0)

    last_layer = n_layers - 1

    def o_map(l, i, k):
        # Only the final layer's tiles are meaningful; keep the block index
        # constant on earlier layers so no stale tiles are written back to HBM.
        return (jnp.where(l == last_layer, i, 0), 0)

    in_specs = [
        a_spec,
        pl.BlockSpec((t, f_in_pad), x_map),
        pl.BlockSpec((f_in_pad, f_pad), lambda l, i, k: (0, 0)),
        pl.BlockSpec((None, f_pad, f_pad), wr_map),
        pl.BlockSpec((None, 1, f_pad), lambda l, i, k: (l, 0, 0)),
    ]
    out_spec = pl.BlockSpec((t, f_pad), o_map)

    kernel = functools.partial(_gcn_stack_kernel, n_layers=n_layers, t=t,
                               a_resident=a_resident)

    out = pl.pallas_call(
        kernel,
        out_shape=jax.ShapeDtypeStruct((n_pad, f_pad), jnp.float32),
        grid_spec=pltpu.PrefetchScalarGridSpec(
            num_scalar_prefetch=0,
            grid=(n_layers, ni, nk),
            in_specs=in_specs,
            out_specs=out_spec,
            scratch_shapes=[
                pltpu.VMEM((n_pad, f_pad), jnp.bfloat16),   # Z (single, in-place)
                pltpu.VMEM((n_pad, f_pad), jnp.bfloat16),   # XW (per layer)
                pltpu.VMEM((t, f_pad), jnp.float32),        # aggregation acc
            ],
        ),
        compiler_params=pltpu.CompilerParams(
            dimension_semantics=("arbitrary", "arbitrary", "arbitrary"),
            vmem_limit_bytes=vmem_limit,
        ),
    )(a_t, x_p, w0_p, wr_p, b_p)

    return out[:n, :out_dims[-1]]


def make_gcn_params(key, in_dim, hid_dims):
    """Deterministic Glorot-ish init for each GraphConv layer's (W, b)."""
    dims = [in_dim] + list(hid_dims)
    params = []
    for i in range(len(dims) - 1):
        key, kw = jax.random.split(key)
        fan_in, fan_out = dims[i], dims[i + 1]
        scale = jnp.sqrt(6.0 / (fan_in + fan_out)).astype(jnp.float32)
        w = jax.random.uniform(
            kw, (fan_in, fan_out), dtype=jnp.float32, minval=-1.0, maxval=1.0
        ) * scale
        b = jnp.zeros((fan_out,), dtype=jnp.float32)
        params.append((w, b))
    return params


def normalize_adjacency(adj):
    """A_hat = D^{-1/2} (A + I) D^{-1/2}  (plain-JAX glue, done once)."""
    n = adj.shape[0]
    a = adj + jnp.eye(n, dtype=adj.dtype)
    deg = jnp.sum(a, axis=1)
    d_inv_sqrt = jnp.where(deg > 0, 1.0 / jnp.sqrt(deg), 0.0)
    return a * d_inv_sqrt[:, None] * d_inv_sqrt[None, :]


def gcn_reference(a_hat, x, params):
    """Pure-JAX f32 reference (same semantics as the PyTorch module)."""
    z = x
    for li, (w, b) in enumerate(params):
        z = a_hat @ (z @ w) + b
        if li < len(params) - 1:
            z = jnp.maximum(z, 0.0)
    return z


if __name__ == "__main__":
    # Small shapes consistent with the module: N=8 nodes, in_dim=16,
    # hid_dims=(32, 8) -> two GraphConv layers (ReLU on first, none on last).
    key = jax.random.PRNGKey(0)
    k_adj, k_x, k_p = jax.random.split(key, 3)

    N, in_dim = 8, 16
    hid_dims = (32, 8)

    # Random symmetric 0/1 adjacency.
    rand = jax.random.uniform(k_adj, (N, N))
    adj = (rand + rand.T > 1.0).astype(jnp.float32)
    adj = adj * (1.0 - jnp.eye(N, dtype=jnp.float32))
    a_hat = normalize_adjacency(adj)

    x = jax.random.normal(k_x, (N, in_dim), dtype=jnp.float32)
    params = make_gcn_params(k_p, in_dim, hid_dims)

    z = gcn_forward(a_hat, x, params)
    jax.block_until_ready(z)
    assert z.shape == (N, hid_dims[-1]), z.shape

    # Loose check vs f32 reference (kernel uses bf16 matmul inputs).
    z_ref = gcn_reference(a_hat, x, params)
    err = float(jnp.max(jnp.abs(z - z_ref)))
    scale = float(jnp.max(jnp.abs(z_ref))) + 1e-6
    assert err <= 0.05 * scale + 0.05, (err, scale)

    print("KERNEL_OK")
</pallas_src>

<mosaic_0001>
module attributes {stable_mosaic.version = 11 : i64} {
  func.func @_gcn_stack_kernel(%arg0: i32, %arg1: i32, %arg2: i32, %arg3: memref<1x16x16xbf16, #tpu.memory_space<vmem>>, %arg4: memref<16x128xbf16, #tpu.memory_space<vmem>>, %arg5: memref<128x128xbf16, #tpu.memory_space<vmem>>, %arg6: memref<1x128x128xbf16, #tpu.memory_space<vmem>>, %arg7: memref<1x1x128xf32, #tpu.memory_space<vmem>>, %arg8: memref<16x128xf32, #tpu.memory_space<vmem>>, %arg9: memref<16x128xbf16, #tpu.memory_space<vmem>>, %arg10: memref<16x128xbf16, #tpu.memory_space<vmem>>, %arg11: memref<16x128xf32, #tpu.memory_space<vmem>>) attributes {dimension_semantics = [#tpu.dimension_semantics<arbitrary>, #tpu.dimension_semantics<arbitrary>, #tpu.dimension_semantics<arbitrary>], iteration_bounds = array<i64: 2, 1, 1>, scalar_prefetch = 0 : i64, scratch_operands = 3 : i64, tpu.core_type = #tpu.core_type<tc>, window_params = [{transform_indices = @transform_0, window_bounds = array<i64: 1, 16, 16>}, {transform_indices = @transform_1, window_bounds = array<i64: 16, 128>}, {pipeline_mode = #tpu.pipeline_mode<synchronous>, transform_indices = @transform_2, window_bounds = array<i64: 128, 128>}, {transform_indices = @transform_3, window_bounds = array<i64: 1, 128, 128>}, {transform_indices = @transform_4, window_bounds = array<i64: 1, 1, 128>}, {transform_indices = @transform_5, window_bounds = array<i64: 16, 128>}]} {
    %c16_i32 = arith.constant 16 : i32
    %0 = arith.muli %arg2, %c16_i32 : i32
    %1 = tpu.assume_multiple %0, 16 : i32
    %c16_i32_0 = arith.constant 16 : i32
    %2 = arith.muli %arg1, %c16_i32_0 : i32
    %3 = tpu.assume_multiple %2, 16 : i32
    %c0_i32 = arith.constant 0 : i32
    %4 = arith.cmpi eq, %arg1, %c0_i32 : i32
    %5 = arith.extui %4 : i1 to i32
    %c0_i32_1 = arith.constant 0 : i32
    %6 = arith.cmpi ne, %5, %c0_i32_1 : i32
    scf.if %6 {
      %c0_i32_13 = arith.constant 0 : i32
      %21 = arith.cmpi eq, %arg0, %c0_i32_13 : i32
      %22 = arith.extui %21 : i1 to i32
      %c0_i32_14 = arith.constant 0 : i32
      %23 = arith.cmpi ne, %22, %c0_i32_14 : i32
      scf.if %23 {
        %c0_17 = arith.constant 0 : index
        %c0_18 = arith.constant 0 : index
        %27 = vector.load %arg4[%c0_17, %c0_18] : memref<16x128xbf16, #tpu.memory_space<vmem>>, vector<16x128xbf16>
        %c0_19 = arith.constant 0 : index
        %c0_20 = arith.constant 0 : index
        %28 = vector.load %arg5[%c0_19, %c0_20] : memref<128x128xbf16, #tpu.memory_space<vmem>>, vector<128x128xbf16>
        %cst_21 = arith.constant dense<0.000000e+00> : vector<16x128xf32>
        %29 = tpu.matmul %27, %28, %cst_21 {dimension_numbers = #tpu.dot_dimension_numbers<[1], [0], [0], [1], [0, 0, 1, 1], [], []>} : vector<16x128xbf16>, vector<128x128xbf16>, vector<16x128xf32> -> vector<16x128xf32>
        %30 = arith.truncf %29 : vector<16x128xf32> to vector<16x128xbf16>
        %31 = arith.index_cast %1 : i32 to index
        %c0_22 = arith.constant 0 : index
        %32 = vector.load %arg10[%31, %c0_22] : memref<16x128xbf16, #tpu.memory_space<vmem>>, vector<16x128xbf16>
        tpu.vector_store %arg10[%31, %c0_22], %30 {strides = array<i32>} : memref<16x128xbf16, #tpu.memory_space<vmem>>, vector<16x128xbf16>,
      } else {
      }
      %c0_i32_15 = arith.constant 0 : i32
      %24 = arith.cmpi sgt, %arg0, %c0_i32_15 : i32
      %25 = arith.extui %24 : i1 to i32
      %c0_i32_16 = arith.constant 0 : i32
      %26 = arith.cmpi ne, %25, %c0_i32_16 : i32
      scf.if %26 {
        %27 = arith.index_cast %1 : i32 to index
        %c0_17 = arith.constant 0 : index
        %28 = vector.load %arg9[%27, %c0_17] : memref<16x128xbf16, #tpu.memory_space<vmem>>, vector<16x128xbf16>
        %c0_18 = arith.constant 0 : index
        %c0_19 = arith.constant 0 : index
        %c0_20 = arith.constant 0 : index
        %29 = vector.load %arg6[%c0_18, %c0_19, %c0_20] : memref<1x128x128xbf16, #tpu.memory_space<vmem>>, vector<1x128x128xbf16>
        %30 = vector.shape_cast %29 : vector<1x128x128xbf16> to vector<128x128xbf16>
        %cst_21 = arith.constant dense<0.000000e+00> : vector<16x128xf32>
        %31 = tpu.matmul %28, %30, %cst_21 {dimension_numbers = #tpu.dot_dimension_numbers<[1], [0], [0], [1], [0, 0, 1, 1], [], []>} : vector<16x128xbf16>, vector<128x128xbf16>, vector<16x128xf32> -> vector<16x128xf32>
        %32 = arith.truncf %31 : vector<16x128xf32> to vector<16x128xbf16>
        %33 = arith.index_cast %1 : i32 to index
        %c0_22 = arith.constant 0 : index
        %34 = vector.load %arg10[%33, %c0_22] : memref<16x128xbf16, #tpu.memory_space<vmem>>, vector<16x128xbf16>
        tpu.vector_store %arg10[%33, %c0_22], %32 {strides = array<i32>} : memref<16x128xbf16, #tpu.memory_space<vmem>>, vector<16x128xbf16>,
      } else {
      }
    } else {
    }
    %c0_i32_2 = arith.constant 0 : i32
    %7 = arith.cmpi eq, %arg2, %c0_i32_2 : i32
    %8 = arith.extui %7 : i1 to i32
    %c0_i32_3 = arith.constant 0 : i32
    %9 = arith.cmpi ne, %8, %c0_i32_3 : i32
    scf.if %9 {
      %cst_13 = arith.constant 0.000000e+00 : f32
      %21 = vector.broadcast %cst_13 : f32 to vector<16x128xf32>
      %c0_14 = arith.constant 0 : index
      %c0_15 = arith.constant 0 : index
      %22 = vector.load %arg11[%c0_14, %c0_15] : memref<16x128xf32, #tpu.memory_space<vmem>>, vector<16x128xf32>
      tpu.vector_store %arg11[%c0_14, %c0_15], %21 {strides = array<i32>} : memref<16x128xf32, #tpu.memory_space<vmem>>, vector<16x128xf32>,
    } else {
    }
    %c0 = arith.constant 0 : index
    %c0_4 = arith.constant 0 : index
    %c0_5 = arith.constant 0 : index
    %10 = vector.load %arg3[%c0, %c0_4, %c0_5] : memref<1x16x16xbf16, #tpu.memory_space<vmem>>, vector<1x16x16xbf16>
    %11 = vector.shape_cast %10 : vector<1x16x16xbf16> to vector<16x16xbf16>
    %c0_6 = arith.constant 0 : index
    %c0_7 = arith.constant 0 : index
    %12 = vector.load %arg11[%c0_6, %c0_7] : memref<16x128xf32, #tpu.memory_space<vmem>>, vector<16x128xf32>
    %13 = arith.index_cast %1 : i32 to index
    %c0_8 = arith.constant 0 : index
    %14 = vector.load %arg10[%13, %c0_8] : memref<16x128xbf16, #tpu.memory_space<vmem>>, vector<16x128xbf16>
    %cst = arith.constant dense<0.000000e+00> : vector<16x128xf32>
    %15 = tpu.matmul %11, %14, %cst {dimension_numbers = #tpu.dot_dimension_numbers<[1], [0], [0], [1], [0, 0, 1, 1], [], []>} : vector<16x16xbf16>, vector<16x128xbf16>, vector<16x128xf32> -> vector<16x128xf32>
    %16 = arith.addf %12, %15 : vector<16x128xf32>
    %c0_9 = arith.constant 0 : index
    %c0_10 = arith.constant 0 : index
    %17 = vector.load %arg11[%c0_9, %c0_10] : memref<16x128xf32, #tpu.memory_space<vmem>>, vector<16x128xf32>
    tpu.vector_store %arg11[%c0_9, %c0_10], %16 {strides = array<i32>} : memref<16x128xf32, #tpu.memory_space<vmem>>, vector<16x128xf32>,
    %c0_i32_11 = arith.constant 0 : i32
    %18 = arith.cmpi eq, %arg2, %c0_i32_11 : i32
    %19 = arith.extui %18 : i1 to i32
    %c0_i32_12 = arith.constant 0 : i32
    %20 = arith.cmpi ne, %19, %c0_i32_12 : i32
    scf.if %20 {
      %c0_13 = arith.constant 0 : index
      %c0_14 = arith.constant 0 : index
      %21 = vector.load %arg11[%c0_13, %c0_14] : memref<16x128xf32, #tpu.memory_space<vmem>>, vector<16x128xf32>
      %c0_15 = arith.constant 0 : index
      %c0_16 = arith.constant 0 : index
      %c0_17 = arith.constant 0 : index
      %22 = vector.load %arg7[%c0_15, %c0_16, %c0_17] : memref<1x1x128xf32, #tpu.memory_space<vmem>>, vector<1x1x128xf32>
      %23 = vector.shape_cast %22 : vector<1x1x128xf32> to vector<1x128xf32>
      %24 = vector.broadcast %23 : vector<1x128xf32> to vector<16x128xf32>
      %25 = arith.addf %21, %24 : vector<16x128xf32>
      %c1_i32 = arith.constant 1 : i32
      %26 = arith.cmpi slt, %arg0, %c1_i32 : i32
      %27 = arith.extui %26 : i1 to i32
      %c0_i32_18 = arith.constant 0 : i32
      %28 = arith.cmpi ne, %27, %c0_i32_18 : i32
      scf.if %28 {
        %cst_21 = arith.constant 0.000000e+00 : f32
        %32 = vector.broadcast %cst_21 : f32 to vector<16x128xf32>
        %33 = arith.maximumf %25, %32 : vector<16x128xf32>
        %34 = arith.truncf %33 : vector<16x128xf32> to vector<16x128xbf16>
        %35 = arith.index_cast %3 : i32 to index
        %c0_22 = arith.constant 0 : index
        %36 = vector.load %arg9[%35, %c0_22] : memref<16x128xbf16, #tpu.memory_space<vmem>>, vector<16x128xbf16>
        tpu.vector_store %arg9[%35, %c0_22], %34 {strides = array<i32>} : memref<16x128xbf16, #tpu.memory_space<vmem>>, vector<16x128xbf16>,
      } else {
      }
      %c1_i32_19 = arith.constant 1 : i32
      %29 = arith.cmpi eq, %arg0, %c1_i32_19 : i32
      %30 = arith.extui %29 : i1 to i32
      %c0_i32_20 = arith.constant 0 : i32
      %31 = arith.cmpi ne, %30, %c0_i32_20 : i32
      scf.if %31 {
        %c0_21 = arith.constant 0 : index
        %c0_22 = arith.constant 0 : index
        %32 = vector.load %arg8[%c0_21, %c0_22] : memref<16x128xf32, #tpu.memory_space<vmem>>, vector<16x128xf32>
        tpu.vector_store %arg8[%c0_21, %c0_22], %25 {strides = array<i32>} : memref<16x128xf32, #tpu.memory_space<vmem>>, vector<16x128xf32>,
      } else {
      }
    } else {
    }
    return
  }
  func.func @transform_0(%arg0: i32, %arg1: i32, %arg2: i32) -> (i32, i32, i32) {
    %c0_i32 = arith.constant 0 : i32
    %c0_i32_0 = arith.constant 0 : i32
    return %arg2, %arg1, %c0_i32 : i32, i32, i32
  }
  func.func @transform_1(%arg0: i32, %arg1: i32, %arg2: i32) -> (i32, i32) {
    %c0_i32 = arith.constant 0 : i32
    %0 = arith.cmpi eq, %arg0, %c0_i32 : i32
    %c0_i32_0 = arith.constant 0 : i32
    %1 = arith.cmpi eq, %arg1, %c0_i32_0 : i32
    %2 = arith.andi %0, %1 : i1
    %c0_i32_1 = arith.constant 0 : i32
    %3 = arith.select %2, %arg2, %c0_i32_1 : i32
    %c0_i32_2 = arith.constant 0 : i32
    %c0_i32_3 = arith.constant 0 : i32
    return %3, %c0_i32_2 : i32, i32
  }
  func.func @transform_2(%arg0: i32, %arg1: i32, %arg2: i32) -> (i32, i32) {
    %c0_i32 = arith.constant 0 : i32
    %c0_i32_0 = arith.constant 0 : i32
    %c0_i32_1 = arith.constant 0 : i32
    return %c0_i32, %c0_i32_0 : i32, i32
  }
  func.func @transform_3(%arg0: i32, %arg1: i32, %arg2: i32) -> (i32, i32, i32) {
    %c1_i32 = arith.constant 1 : i32
    %0 = arith.subi %arg0, %c1_i32 : i32
    %c0_i32 = arith.constant 0 : i32
    %1 = arith.maxsi %0, %c0_i32 : i32
    %c0_i32_0 = arith.constant 0 : i32
    %c0_i32_1 = arith.constant 0 : i32
    %c0_i32_2 = arith.constant 0 : i32
    return %1, %c0_i32_0, %c0_i32_1 : i32, i32, i32
  }
  func.func @transform_4(%arg0: i32, %arg1: i32, %arg2: i32) -> (i32, i32, i32) {
    %c0_i32 = arith.constant 0 : i32
    %c0_i32_0 = arith.constant 0 : i32
    %c0_i32_1 = arith.constant 0 : i32
    return %arg0, %c0_i32, %c0_i32_0 : i32, i32, i32
  }
  func.func @transform_5(%arg0: i32, %arg1: i32, %arg2: i32) -> (i32, i32) {
    %c1_i32 = arith.constant 1 : i32
    %0 = arith.cmpi eq, %arg0, %c1_i32 : i32
    %c0_i32 = arith.constant 0 : i32
    %1 = arith.select %0, %arg1, %c0_i32 : i32
    %c0_i32_0 = arith.constant 0 : i32
    %c0_i32_1 = arith.constant 0 : i32
    return %1, %c0_i32_0 : i32, i32
  }
}

</mosaic_0001>

<llo_original>
// kernel: tpu_custom_call.1
$region0: #{tpu_custom_call.1}
  #allocation0 [shape = 'u32[]', space=smem, size = 0x4, offset = 0x4, fixed_abs, tag = 'smem constant byte address 0x4 - core index']
  #allocation1 [shape = 'u32[144,128]{1,0:T(1,128)}', space=vmem, size = 0x12000, scoped, tag = 'internal scratch']
  #allocation2 [shape = 'bf16[16,128]{1,0:T(16,128)(2,1)}', space=vmem, size = 0x1000, scoped, tag = 'scratch operand']
  #allocation3 [shape = 'bf16[16,128]{1,0:T(16,128)(2,1)}', space=vmem, size = 0x1000, scoped, tag = 'scratch operand']
  #allocation4 [shape = 'f32[16,128]{1,0:T(8,128)}', space=vmem, size = 0x2000, scoped, tag = 'scratch operand']
  %s0 = inlined_call_operand.hbm [shape: bf16[1,16,16], index: 0, kind: input, shape index: {}]
  %s1 = inlined_call_operand.hbm [shape: bf16[16,128], index: 1, kind: input, shape index: {}]
  %s2 = inlined_call_operand.hbm [shape: bf16[128,128], index: 2, kind: input, shape index: {}]
  %s3 = inlined_call_operand.hbm [shape: bf16[1,128,128], index: 3, kind: input, shape index: {}]
  %s4 = inlined_call_operand.vmem [shape: f32[2,1,128], index: 4, kind: input, shape index: {}]
  %s5 = inlined_call_operand.hbm [shape: f32[16,128], index: 5, kind: output, shape index: {}]
  %s6 = sld [smem:[#allocation0]]
  $region97: #{tpu_custom_call.1} parent=0
    _
  %s8 = ssub.s32 1, %s6
  %s9 = scalar_select 0, %s8, %s6
  $region1: #{tpu_custom_call.1} parent=0
    #allocation5 [shape = 'u8[4096]{0}', space=vmem, size = 0x1000, scoped, tag = 'input window, operand 0, single buffered']
    #allocation6 [shape = 's32[2]{0}', space=sflag, size = 0x8, scoped, tag = 'scoped memory for tpu_custom_call.1']
    #allocation7 [shape = 's32[2]{0}', space=sflag, size = 0x8, scoped, tag = 'scoped memory for tpu_custom_call.1']
    #allocation8 [shape = 'u8[8192]{0}', space=vmem, size = 0x2000, scoped, tag = 'input window, operand 1']
    #allocation9 [shape = 's32[2]{0}', space=sflag, size = 0x8, scoped, tag = 'scoped memory for tpu_custom_call.1']
    #allocation10 [shape = 'u8[32768]{0}', space=vmem, size = 0x8000, scoped, tag = 'input window, operand 2, single buffered']
    #allocation11 [shape = 'u8[65536]{0}', space=vmem, size = 0x10000, scoped, tag = 'input window, operand 3']
    #allocation12 [shape = 's32[2]{0}', space=sflag, size = 0x8, scoped, tag = 'scoped memory for tpu_custom_call.1']
    #allocation13 [shape = 'u8[16384]{0}', space=vmem, size = 0x4000, scoped, tag = 'output window, operand 0']
    %10 = vsyncpa [#allocation6], 0
    %11 = vsyncpa [#allocation9], 0
    %s12 = scalar_lea.sflag [#allocation9], 1
    %13 = vsyncpa %s12, 0
    %14 = vsyncpa [#allocation12], 0
    %s15 = scalar_lea.sflag [#allocation12], 1
    %16 = vsyncpa %s15, 0
    %17 = vsyncpa [#allocation7], 0
    %s18 = scalar_lea.sflag [#allocation7], 1
    %19 = vsyncpa %s18, 0
    loop: start=0, step=1, limit=4
    $region2: #{tpu_custom_call.1} parent=1 // loop_pre_header
      _
    $region3: #{tpu_custom_call.1} parent=1 // loop_header
      %s21 = sphi 0, %s25
      %p22 = scmp.ge.s32.totalorder %s21, 4
      %s28 = sphi 0, %s47
      %s29 = sphi 0, %s43
      %s30 = sphi 0, %s39
      %s31 = sphi 0, %s28
      %s32 = sphi 0, %s29
      %s33 = sphi 0, %s30
      %s34 = sphi 0, %s31
      %s35 = sphi 0, %s32
      %s36 = sphi 0, %s33
      %s52 = sphi 0, %s54
      %s55 = sphi 0, %s52
      %s56 = sphi 0, %s55
      %s72 = sphi 0, %s56
      %s88 = sphi 0, %s90
      %s91 = sphi 0, %s88
      %s92 = sphi 0, %s91
      %s108 = sphi 0, %s92
      %s112 = sphi 0, %s112
      %s114 = sphi 0, %s112
      %s115 = sphi 0, %s114
      %s129 = sphi 0, %s115
      %s141 = sphi 0, %s143
      %s144 = sphi 0, %s141
      %s145 = sphi 0, %s144
      %s161 = sphi 0, %s145
      %s167 = sphi 0, %s169
      %s170 = sphi 0, %s167
      %s171 = sphi 0, %s170
      %s187 = sphi 0, %s171
      %s197 = sphi 0, %s199
      %s200 = sphi 0, %s197
      %s201 = sphi 0, %s200
      %s217 = sphi 0, %s201
    $region4: #{tpu_custom_call.1} parent=1 // loop_header_branch
      %24 = sbr.rel (%p22) target = $region8
    $region5: #{tpu_custom_call.1} parent=1 // loop_body
      %s26 = ssub.s32 %s21, 1
      %s27 = ssub.s32 %s21, 2
      %s37 = sadd.s32 1, %s30
      %p38 = scmp.ge.s32.totalorder %s37, 1
      %s39 = scalar_select %p38, 0, %s37
      %s40 = sadd.s32 1, %s29
      %s41 = scalar_select %p38, %s40, %s29
      %p42 = scmp.ge.s32.totalorder %s41, 1
      %s43 = scalar_select %p42, 0, %s41
      %s44 = sadd.s32 1, %s28
      %s45 = scalar_select %p42, %s44, %s28
      %p46 = scmp.ge.s32.totalorder %s45, 2
      %s47 = scalar_select %p46, 0, %s45
      %s48 = ssub.s32 %s30, %s39
      %s49 = ssub.s32 %s29, %s43
      %s50 = sor.u32 %s48, %s49
      %p51 = scmp.eq.s32.totalorder %s50, 0
      %s53 = sadd.s32 %s52, 1
      %s54 = scalar_select %p51, %s52, %s53
      %p57 = pneg %p51
      %p58 = scmp.eq.s32.totalorder %s21, 1
      %p59 = por %p57, %p58
      %p60 = scmp.ne.s32.totalorder %s52, %s55
      %p61 = scmp.eq.s32.totalorder %s21, 0
      %p62 = por %p60, %p61
      %p63 = scmp.ne.s32.totalorder %s52, %s55
      %p64 = scmp.eq.s32.totalorder %s26, 1
      %p65 = por %p63, %p64
      %p66 = scmp.ne.s32.totalorder %s55, %s56
      %p67 = scmp.eq.s32.totalorder %s26, 0
      %p68 = por %p66, %p67
      %p69 = scmp.ne.s32.totalorder %s55, %s56
      %p70 = scmp.eq.s32.totalorder %s27, 1
      %p71 = por %p69, %p70
      %p73 = scmp.ne.s32.totalorder %s56, %s72
      %p74 = scmp.eq.s32.totalorder %s27, 0
      %p75 = por %p73, %p74
      %p76 = scmp.eq.s32.totalorder %s28, 0
      %p77 = scmp.eq.s32.totalorder %s29, 0
      %p78 = pnand %p76, %p77
      %p79 = pneg %p78
      %s80 = scalar_select %p79, %s30, 0
      %p81 = scmp.eq.s32.totalorder %s47, 0
      %p82 = scmp.eq.s32.totalorder %s43, 0
      %p83 = pnand %p81, %p82
      %p84 = pneg %p83
      %s85 = scalar_select %p84, %s39, 0
      %s86 = ssub.s32 %s80, %s85
      %p87 = scmp.eq.s32.totalorder %s86, 0
      %s89 = sadd.s32 %s88, 1
      %s90 = scalar_select %p87, %s88, %s89
      %p93 = pneg %p87
      %p94 = scmp.eq.s32.totalorder %s21, 1
      %p95 = por %p93, %p94
      %p96 = scmp.ne.s32.totalorder %s88, %s91
      %p97 = scmp.eq.s32.totalorder %s21, 0
      %p98 = por %p96, %p97
      %p99 = scmp.ne.s32.totalorder %s88, %s91
      %p100 = scmp.eq.s32.totalorder %s26, 1
      %p101 = por %p99, %p100
      %p102 = scmp.ne.s32.totalorder %s91, %s92
      %p103 = scmp.eq.s32.totalorder %s26, 0
      %p104 = por %p102, %p103
      %p105 = scmp.ne.s32.totalorder %s91, %s92
      %p106 = scmp.eq.s32.totalorder %s27, 1
      %p107 = por %p105, %p106
      %p109 = scmp.ne.s32.totalorder %s92, %s108
      %p110 = scmp.eq.s32.totalorder %s27, 0
      %p111 = por %p109, %p110
      %s113 = sadd.s32 %s112, 1
      %p116 = scmp.eq.s32.totalorder %s21, 1
      %p117 = scmp.ne.s32.totalorder %s112, %s114
      %p118 = scmp.eq.s32.totalorder %s21, 0
      %p119 = por %p117, %p118
      %p120 = scmp.ne.s32.totalorder %s112, %s114
      %p121 = scmp.eq.s32.totalorder %s26, 1
      %p122 = por %p120, %p121
      %p123 = scmp.ne.s32.totalorder %s114, %s115
      %p124 = scmp.eq.s32.totalorder %s26, 0
      %p125 = por %p123, %p124
      %p126 = scmp.ne.s32.totalorder %s114, %s115
      %p127 = scmp.eq.s32.totalorder %s27, 1
      %p128 = por %p126, %p127
      %p130 = scmp.ne.s32.totalorder %s115, %s129
      %p131 = scmp.eq.s32.totalorder %s27, 0
      %p132 = por %p130, %p131
      %s133 = ssub.s32 %s28, 1
      %p134 = scmp.gt.s32.totalorder %s133, 0
      %s135 = scalar_select %p134, %s133, 0
      %s136 = ssub.s32 %s47, 1
      %p137 = scmp.gt.s32.totalorder %s136, 0
      %s138 = scalar_select %p137, %s136, 0
      %s139 = ssub.s32 %s135, %s138
      %p140 = scmp.eq.s32.totalorder %s139, 0
      %s142 = sadd.s32 %s141, 1
      %s143 = scalar_select %p140, %s141, %s142
      %p146 = pneg %p140
      %p147 = scmp.eq.s32.totalorder %s21, 1
      %p148 = por %p146, %p147
      %p149 = scmp.ne.s32.totalorder %s141, %s144
      %p150 = scmp.eq.s32.totalorder %s21, 0
      %p151 = por %p149, %p150
      %p152 = scmp.ne.s32.totalorder %s141, %s144
      %p153 = scmp.eq.s32.totalorder %s26, 1
      %p154 = por %p152, %p153
      %p155 = scmp.ne.s32.totalorder %s144, %s145
      %p156 = scmp.eq.s32.totalorder %s26, 0
      %p157 = por %p155, %p156
      %p158 = scmp.ne.s32.totalorder %s144, %s145
      %p159 = scmp.eq.s32.totalorder %s27, 1
      %p160 = por %p158, %p159
      %p162 = scmp.ne.s32.totalorder %s145, %s161
      %p163 = scmp.eq.s32.totalorder %s27, 0
      %p164 = por %p162, %p163
      %s165 = ssub.s32 %s28, %s47
      %p166 = scmp.eq.s32.totalorder %s165, 0
      %s168 = sadd.s32 %s167, 1
      %s169 = scalar_select %p166, %s167, %s168
      %p172 = pneg %p166
      %p173 = scmp.eq.s32.totalorder %s21, 1
      %p174 = por %p172, %p173
      %p175 = scmp.ne.s32.totalorder %s167, %s170
      %p176 = scmp.eq.s32.totalorder %s21, 0
      %p177 = por %p175, %p176
      %p178 = scmp.ne.s32.totalorder %s167, %s170
      %p179 = scmp.eq.s32.totalorder %s26, 1
      %p180 = por %p178, %p179
      %p181 = scmp.ne.s32.totalorder %s170, %s171
      %p182 = scmp.eq.s32.totalorder %s26, 0
      %p183 = por %p181, %p182
      %p184 = scmp.ne.s32.totalorder %s170, %s171
      %p185 = scmp.eq.s32.totalorder %s27, 1
      %p186 = por %p184, %p185
      %p188 = scmp.ne.s32.totalorder %s171, %s187
      %p189 = scmp.eq.s32.totalorder %s27, 0
      %p190 = por %p188, %p189
      %p191 = scmp.eq.s32.totalorder %s28, 1
      %s192 = scalar_select %p191, %s29, 0
      %p193 = scmp.eq.s32.totalorder %s47, 1
      %s194 = scalar_select %p193, %s43, 0
      %s195 = ssub.s32 %s192, %s194
      %p196 = scmp.eq.s32.totalorder %s195, 0
      %s198 = sadd.s32 %s197, 1
      %s199 = scalar_select %p196, %s197, %s198
      %p202 = pneg %p196
      %p203 = scmp.eq.s32.totalorder %s21, 1
      %p204 = por %p202, %p203
      %p205 = scmp.ne.s32.totalorder %s197, %s200
      %p206 = scmp.eq.s32.totalorder %s21, 0
      %p207 = por %p205, %p206
      %p208 = scmp.ne.s32.totalorder %s197, %s200
      %p209 = scmp.eq.s32.totalorder %s26, 1
      %p210 = por %p208, %p209
      %p211 = scmp.ne.s32.totalorder %s200, %s201
      %p212 = scmp.eq.s32.totalorder %s26, 0
      %p213 = por %p211, %p212
      %p214 = scmp.ne.s32.totalorder %s200, %s201
      %p215 = scmp.eq.s32.totalorder %s27, 1
      %p216 = por %p214, %p215
      %p218 = scmp.ne.s32.totalorder %s201, %s217
      %p219 = scmp.eq.s32.totalorder %s27, 0
      %p220 = por %p218, %p219
      %p221 = scmp.le.s32.totalorder 1, %s21
      %p222 = scmp.lt.s32.totalorder %s21, 3
      %p223 = pnand %p221, %p222
      %p224 = pneg %p223
      // Predicated region
      $region9: #{tpu_custom_call.1} parent=5 // pred_check
        _
      $region10: #{tpu_custom_call.1} parent=5 // pred_check_branch
        %226 = sbr.rel (%p223) target = $region12
      $region11: #{tpu_custom_call.1} parent=5 // pred_region
        %s227 = ssub.s32 %s21, 1
        // Predicated region
        $region13: #{tpu_custom_call.1} parent=11 // pred_check
          %p228 = pneg %p68
        $region14: #{tpu_custom_call.1} parent=11 // pred_check_branch
          %230 = sbr.rel (%p228) target = $region16
        $region15: #{tpu_custom_call.1} parent=11 // pred_region
          %s231 = smul.u32 2, %s32
          %s233 = ssub.s32 128, 128
          %234 = vsyncadd [#allocation6], %s233
          %s235 = smul.addr %s33, 2
          %s236 = sadd.s32 %s231, %s235
          %s237 = smul.addr %s236, 64
          %s238 = scalar_lea.hbm %s0, %s237
          %s239 = sshll.u32 [#allocation5], 4
          %s240 = int_to_ptr.vmem [resolvable:$true] %s239
          %245 = dma.hbm_to_vmem [thread:$0]  %s238, 128, %s240, [#allocation6], 64, 64, 4
        $region16: #{tpu_custom_call.1} parent=11 // pred_fallthru
          _
        // Predicated region
        $region17: #{tpu_custom_call.1} parent=11 // pred_check
          %p246 = pneg %p125
        $region18: #{tpu_custom_call.1} parent=11 // pred_check_branch
          %248 = sbr.rel (%p246) target = $region20
        $region19: #{tpu_custom_call.1} parent=11 // pred_region
          %s250 = ssub.s32 1024, 1024
          %251 = vsyncadd [#allocation9], %s250
          %s252 = sshll.u32 [#allocation10], 4
          %s253 = int_to_ptr.vmem [resolvable:$true] %s252
          %258 = dma.hbm_to_vmem [thread:$0]  %s2, 1024, %s253, [#allocation9], 64, 64, 4
        $region20: #{tpu_custom_call.1} parent=11 // pred_fallthru
          _
      $region12: #{tpu_custom_call.1} parent=5 // pred_fallthru
        _
      %p259 = scmp.lt.s32.totalorder %s21, 2
      // Predicated region
      $region21: #{tpu_custom_call.1} parent=5 // pred_check
        %p260 = pneg %p259
      $region22: #{tpu_custom_call.1} parent=5 // pred_check_branch
        %262 = sbr.rel (%p260) target = $region24
      $region23: #{tpu_custom_call.1} parent=5 // pred_region
        // Predicated region
        $region25: #{tpu_custom_call.1} parent=23 // pred_check
          %p263 = pneg %p98
        $region26: #{tpu_custom_call.1} parent=23 // pred_check_branch
          %265 = sbr.rel (%p263) target = $region28
        $region27: #{tpu_custom_call.1} parent=23 // pred_region
          %s266 = sand.u32 %s21, 1
          %s267 = scalar_lea.sflag [#allocation9], %s266
          %s268 = sand.u32 %s88, 1
          %s269 = smul.addr %s268, 8
          %s270 = scalar_lea.vmem [#allocation8], %s269
          %p271 = scmp.eq.s32.totalorder %s28, 0
          %p272 = scmp.eq.s32.totalorder %s29, 0
          %p273 = pnand %p271, %p272
          %p274 = pneg %p273
          %s275 = scalar_select %p274, %s30, 0
          %s276 = smul.u32 2, %s275
          %s278 = ssub.s32 128, 128
          %279 = vsyncadd %s267, %s278
          %s280 = smul.addr %s276, 64
          %s281 = scalar_lea.hbm %s1, %s280
          %s282 = sshll.u32 %s270, 4
          %s283 = int_to_ptr.vmem [resolvable:$true] %s282
          %288 = dma.hbm_to_vmem [thread:$0]  %s281, 128, %s283, %s267, 64, 64, 4
        $region28: #{tpu_custom_call.1} parent=23 // pred_fallthru
          _
        // Predicated region
        $region29: #{tpu_custom_call.1} parent=23 // pred_check
          %p289 = pneg %p151
        $region30: #{tpu_custom_call.1} parent=23 // pred_check_branch
          %291 = sbr.rel (%p289) target = $region32
        $region31: #{tpu_custom_call.1} parent=23 // pred_region
          %s292 = sand.u32 %s141, 1
          %s293 = scalar_lea.sflag [#allocation12], %s292
          %s294 = sand.u32 %s141, 1
          %s295 = smul.addr %s294, 64
          %s296 = scalar_lea.vmem [#allocation11], %s295
          %s297 = ssub.s32 %s28, 1
          %p298 = scmp.gt.s32.totalorder %s297, 0
          %s299 = scalar_select %p298, %s297, 0
          %s301 = ssub.s32 1024, 1024
          %302 = vsyncadd %s293, %s301
          %s303 = smul.addr %s299, 16
          %s304 = smul.addr %s303, 64
          %s305 = scalar_lea.hbm %s3, %s304
          %s306 = sshll.u32 %s296, 4
          %s307 = int_to_ptr.vmem [resolvable:$true] %s306
          %312 = dma.hbm_to_vmem [thread:$0]  %s305, 1024, %s307, %s293, 64, 64, 4
        $region32: #{tpu_custom_call.1} parent=23 // pred_fallthru
          _
        // Predicated region
        $region33: #{tpu_custom_call.1} parent=23 // pred_check
          %p313 = pneg %p177
        $region34: #{tpu_custom_call.1} parent=23 // pred_check_branch
          %315 = sbr.rel (%p313) target = $region36
        $region35: #{tpu_custom_call.1} parent=23 // pred_region
          %p316 = scmp.lt.s32.totalorder %s28, 1
          %s317 = scalar_select %p316, %s28, 1
          %s318 = scalar_lea.vmem %s4, %s317
        $region36: #{tpu_custom_call.1} parent=23 // pred_fallthru
          _
      $region24: #{tpu_custom_call.1} parent=5 // pred_fallthru
        _
      %p319 = scmp.le.s32.totalorder 1, %s21
      %p320 = scmp.lt.s32.totalorder %s21, 3
      %p321 = pnand %p319, %p320
      %p322 = pneg %p321
      // Predicated region
      $region37: #{tpu_custom_call.1} parent=5 // pred_check
        _
      $region38: #{tpu_custom_call.1} parent=5 // pred_check_branch
        %324 = sbr.rel (%p321) target = $region40
      $region39: #{tpu_custom_call.1} parent=5 // pred_region
        %s325 = ssub.s32 %s21, 1
        // Predicated region
        $region41: #{tpu_custom_call.1} parent=39 // pred_check
          %p326 = pneg %p68
        $region42: #{tpu_custom_call.1} parent=39 // pred_check_branch
          %328 = sbr.rel (%p326) target = $region44
        $region43: #{tpu_custom_call.1} parent=39 // pred_region
          %329 = dma.done [#allocation6], 128
        $region44: #{tpu_custom_call.1} parent=39 // pred_fallthru
          _
        %s330 = sand.u32 %s26, 1
        %s331 = scalar_lea.sflag [#allocation9], %s330
        %s332 = sand.u32 %s91, 1
        %s333 = smul.addr %s332, 8
        %s334 = scalar_lea.vmem [#allocation8], %s333
        // Predicated region
        $region45: #{tpu_custom_call.1} parent=39 // pred_check
          %p335 = pneg %p104
        $region46: #{tpu_custom_call.1} parent=39 // pred_check_branch
          %337 = sbr.rel (%p335) target = $region48
        $region47: #{tpu_custom_call.1} parent=39 // pred_region
          %338 = dma.done %s331, 128
        $region48: #{tpu_custom_call.1} parent=39 // pred_fallthru
          _
        // Predicated region
        $region49: #{tpu_custom_call.1} parent=39 // pred_check
          %p339 = pneg %p125
        $region50: #{tpu_custom_call.1} parent=39 // pred_check_branch
          %341 = sbr.rel (%p339) target = $region52
        $region51: #{tpu_custom_call.1} parent=39 // pred_region
          %342 = dma.done [#allocation9], 1024
        $region52: #{tpu_custom_call.1} parent=39 // pred_fallthru
          _
        %s343 = sand.u32 %s144, 1
        %s344 = scalar_lea.sflag [#allocation12], %s343
        %s345 = sand.u32 %s144, 1
        %s346 = smul.addr %s345, 64
        %s347 = scalar_lea.vmem [#allocation11], %s346
        // Predicated region
        $region53: #{tpu_custom_call.1} parent=39 // pred_check
          %p348 = pneg %p157
        $region54: #{tpu_custom_call.1} parent=39 // pred_check_branch
          %350 = sbr.rel (%p348) target = $region56
        $region55: #{tpu_custom_call.1} parent=39 // pred_region
          %351 = dma.done %s344, 1024
        $region56: #{tpu_custom_call.1} parent=39 // pred_fallthru
          _
        %p352 = pneg %p68
        %p353 = pneg %p65
        %s354 = sand.u32 %s26, 1
        %s355 = scalar_lea.sflag [#allocation9], %s354
        %s356 = sand.u32 %s91, 1
        %s357 = smul.addr %s356, 8
        %s358 = scalar_lea.vmem [#allocation8], %s357
        %p359 = pneg %p104
        %p360 = pneg %p101
        %p361 = pneg %p125
        %p362 = pneg %p122
        %s363 = sand.u32 %s144, 1
        %s364 = scalar_lea.sflag [#allocation12], %s363
        %s365 = sand.u32 %s144, 1
        %s366 = smul.addr %s365, 64
        %s367 = scalar_lea.vmem [#allocation11], %s366
        %p368 = pneg %p157
        %p369 = pneg %p154
        %p370 = scmp.lt.s32.totalorder %s31, 1
        %s371 = scalar_select %p370, %s31, 1
        %s372 = scalar_lea.vmem %s4, %s371
        %p373 = pneg %p183
        %p374 = pneg %p180
        %p375 = pneg %p213
        %p376 = pneg %p210
        %s377 = sand.u32 %s200, 1
        %s378 = scalar_lea.sflag [#allocation7], %s377
        %s379 = sand.u32 %s200, 1
        %s380 = smul.addr %s379, 16
        %s381 = scalar_lea.vmem [#allocation13], %s380
        %s382 = smul.u32 2, %s32
        %p383 = scmp.eq.s32.totalorder %s31, 0
        %p384 = scmp.eq.s32.totalorder %s32, 0
        %p385 = pnand %p383, %p384
        %p386 = pneg %p385
        %s387 = scalar_select %p386, %s33, 0
        %s388 = smul.u32 2, %s387
        %s389 = ssub.s32 %s31, 1
        %p390 = scmp.gt.s32.totalorder %s389, 0
        %s391 = scalar_select %p390, %s389, 0
        %p392 = scmp.lt.s32.totalorder %s31, 1
        %s393 = scalar_select %p392, %s31, 1
        %s394 = scalar_lea.vmem %s4, %s393
        %p395 = scmp.eq.s32.totalorder %s31, 1
        %s396 = scalar_select %p395, %s32, 0
        %s397 = smul.u32 2, %s396
        %s399 = smul.u32 %s33, 16
        %s400 = smul.u32 %s32, 16
        %p401 = scmp.eq.s32.totalorder %s32, 0
        // Predicated region
        $region57: #{tpu_custom_call.1} parent=39 // pred_check
          %p402 = pneg %p401
        $region58: #{tpu_custom_call.1} parent=39 // pred_check_branch
          %404 = sbr.rel (%p402) target = $region60
        $region59: #{tpu_custom_call.1} parent=39 // pred_region
          %p405 = scmp.eq.s32.totalorder %s31, 0
          // Predicated region
          $region61: #{tpu_custom_call.1} parent=59 // pred_check
            %p406 = pneg %p405
          $region62: #{tpu_custom_call.1} parent=59 // pred_check_branch
            %408 = sbr.rel (%p406) target = $region64
          $region63: #{tpu_custom_call.1} parent=59 // pred_region
            %v409 = vld [vmem:[%s334] sm:$0xf]
            %v410 = vld [vmem:[%s334 + $0x4] sm:$0xf]
            %v411 = vld [vmem:[#allocation10] sm:$0xf]
            %v412 = vld [vmem:[#allocation10 + $0x4] sm:$0xf]
            %v413 = vld [vmem:[#allocation10 + $0x8] sm:$0xf]
            %v414 = vld [vmem:[#allocation10 + $0xc] sm:$0xf]
            %v415 = vld [vmem:[#allocation10 + $0x10] sm:$0xf]
            %v416 = vld [vmem:[#allocation10 + $0x14] sm:$0xf]
            %v417 = vld [vmem:[#allocation10 + $0x18] sm:$0xf]
            %v418 = vld [vmem:[#allocation10 + $0x1c] sm:$0xf]
            %v419 = vld [vmem:[#allocation10 + $0x20] sm:$0xf]
            %v420 = vld [vmem:[#allocation10 + $0x24] sm:$0xf]
            %v421 = vld [vmem:[#allocation10 + $0x28] sm:$0xf]
            %v422 = vld [vmem:[#allocation10 + $0x2c] sm:$0xf]
            %v423 = vld [vmem:[#allocation10 + $0x30] sm:$0xf]
            %v424 = vld [vmem:[#allocation10 + $0x34] sm:$0xf]
            %v425 = vld [vmem:[#allocation10 + $0x38] sm:$0xf]
            %v426 = vld [vmem:[#allocation10 + $0x3c] sm:$0xf]
            %v429 = vunpack.c.l.b16 %v409
            %v430 = vunpack.c.l.b16 %v410
            %v431 = vpack.c.b16 %v430, %v429
            %v449 = vunpack.c.l.b16 %v411
            %v450 = vunpack.c.l.b16 %v412
            %v451 = vunpack.c.l.b16 %v413
            %v452 = vunpack.c.l.b16 %v414
            %v453 = vunpack.c.l.b16 %v415
            %v454 = vunpack.c.l.b16 %v416
            %v455 = vunpack.c.l.b16 %v417
            %v456 = vunpack.c.l.b16 %v418
            %v457 = vunpack.c.l.b16 %v419
            %v458 = vunpack.c.l.b16 %v420
            %v459 = vunpack.c.l.b16 %v421
            %v460 = vunpack.c.l.b16 %v422
            %v461 = vunpack.c.l.b16 %v423
            %v462 = vunpack.c.l.b16 %v424
            %v463 = vunpack.c.l.b16 %v425
            %v464 = vunpack.c.l.b16 %v426
            %v465 = vpack.c.b16 %v450, %v449
            %v466 = vpack.c.b16 %v452, %v451
            %v467 = vpack.c.b16 %v454, %v453
            %v468 = vpack.c.b16 %v456, %v455
            %v469 = vpack.c.b16 %v458, %v457
            %v470 = vpack.c.b16 %v460, %v459
            %v471 = vpack.c.b16 %v462, %v461
            %v472 = vpack.c.b16 %v464, %v463
            %481 = vmatprep.subr.bf16.mxu0 0
            %482 = vmatpush1.bf16.msra.mxu0 %v465
            %483 = vmatprep.subr.bf16.mxu0 0
            %484 = vmatpush1.bf16.msra.mxu0 %v466
            %485 = vmatprep.subr.bf16.mxu0 0
            %486 = vmatpush1.bf16.msra.mxu0 %v467
            %487 = vmatprep.subr.bf16.mxu0 0
            %488 = vmatpush1.bf16.msra.mxu0 %v468
            %489 = vmatprep.subr.bf16.mxu0 0
            %490 = vmatpush1.bf16.msra.mxu0 %v469
            %491 = vmatprep.subr.bf16.mxu0 0
            %492 = vmatpush1.bf16.msra.mxu0 %v470
            %493 = vmatprep.subr.bf16.mxu0 0
            %494 = vmatpush1.bf16.msra.mxu0 %v471
            %495 = vmatprep.subr.bf16.mxu0 0
            %496 = vmatpush1.bf16.msra.mxu0 %v472
            %497 = vmatprep.subr.bf16.mxu0 0
            %498 = vmatpush1.bf16.msra.mxu0 0
            %499 = vmatprep.subr.bf16.mxu0 0
            %500 = vmatpush1.bf16.msra.mxu0 0
            %501 = vmatprep.subr.bf16.mxu0 0
            %502 = vmatpush1.bf16.msra.mxu0 0
            %503 = vmatprep.subr.bf16.mxu0 0
            %504 = vmatpush1.bf16.msra.mxu0 0
            %505 = vmatprep.subr.bf16.mxu0 0
            %506 = vmatpush1.bf16.msra.mxu0 0
            %507 = vmatprep.subr.bf16.mxu0 0
            %508 = vmatpush1.bf16.msra.mxu0 0
            %509 = vmatprep.subr.bf16.mxu0 0
            %510 = vmatpush1.bf16.msra.mxu0 0
            %511 = vmatprep.subr.bf16.mxu0 0
            %512 = vmatpush1.bf16.msra.mxu0 0
            %513 = vmatprep.mubr.bf16.mxu0 0
            %514 = vmatmul.mubr.bf16.gmra.mrb[0].mxu0 %v431
            %v515 = vpop.f32.mrb[0].mxu0
            %v516 = vadd.f32 0.0, %v515
            %v517 = vpop.f32.mrb[0].mxu0
            %v518 = vpop.f32.mrb[0].mxu0
            %v519 = vadd.f32 0.0, %v518
            %v520 = vpop.f32.mrb[0].mxu0
            %521 = vdwg.mxu0
            %v522 = vpack.c.bf16 %v519, %v516
            %s523 = sshra.s32 %s399, 4
            %s524 = sand.u32 %s399, 15
            %s525 = smul.addr %s523, 8
            %s526 = scalar_lea.vmem [#allocation3], %s525
            %527 = vst [vmem:[%s526] sm:$0xff] %v522
          $region64: #{tpu_custom_call.1} parent=59 // pred_fallthru
            _
          %p528 = scmp.gt.s32.totalorder %s31, 0
          // Predicated region
          $region65: #{tpu_custom_call.1} parent=59 // pred_check
            %p529 = pneg %p528
          $region66: #{tpu_custom_call.1} parent=59 // pred_check_branch
            %531 = sbr.rel (%p529) target = $region68
          $region67: #{tpu_custom_call.1} parent=59 // pred_region
            %s532 = sshra.s32 %s399, 4
            %s533 = sand.u32 %s399, 15
            %s534 = smul.addr %s532, 8
            %s535 = scalar_lea.vmem [#allocation2], %s534
            %v536 = vld [vmem:[%s535] sm:$0xff]
            %v537 = vld [vmem:[%s347] sm:$0xf]
            %v538 = vld [vmem:[%s347 + $0x4] sm:$0xf]
            %v539 = vld [vmem:[%s347 + $0x8] sm:$0xf]
            %v540 = vld [vmem:[%s347 + $0xc] sm:$0xf]
            %v541 = vld [vmem:[%s347 + $0x10] sm:$0xf]
            %v542 = vld [vmem:[%s347 + $0x14] sm:$0xf]
            %v543 = vld [vmem:[%s347 + $0x18] sm:$0xf]
            %v544 = vld [vmem:[%s347 + $0x1c] sm:$0xf]
            %v545 = vld [vmem:[%s347 + $0x20] sm:$0xf]
            %v546 = vld [vmem:[%s347 + $0x24] sm:$0xf]
            %v547 = vld [vmem:[%s347 + $0x28] sm:$0xf]
            %v548 = vld [vmem:[%s347 + $0x2c] sm:$0xf]
            %v549 = vld [vmem:[%s347 + $0x30] sm:$0xf]
            %v550 = vld [vmem:[%s347 + $0x34] sm:$0xf]
            %v551 = vld [vmem:[%s347 + $0x38] sm:$0xf]
            %v552 = vld [vmem:[%s347 + $0x3c] sm:$0xf]
            %v569 = vunpack.c.l.b16 %v537
            %v570 = vunpack.c.l.b16 %v538
            %v571 = vunpack.c.l.b16 %v539
            %v572 = vunpack.c.l.b16 %v540
            %v573 = vunpack.c.l.b16 %v541
            %v574 = vunpack.c.l.b16 %v542
            %v575 = vunpack.c.l.b16 %v543
            %v576 = vunpack.c.l.b16 %v544
            %v577 = vunpack.c.l.b16 %v545
            %v578 = vunpack.c.l.b16 %v546
            %v579 = vunpack.c.l.b16 %v547
            %v580 = vunpack.c.l.b16 %v548
            %v581 = vunpack.c.l.b16 %v549
            %v582 = vunpack.c.l.b16 %v550
            %v583 = vunpack.c.l.b16 %v551
            %v584 = vunpack.c.l.b16 %v552
            %v585 = vpack.c.b16 %v570, %v569
            %v586 = vpack.c.b16 %v572, %v571
            %v587 = vpack.c.b16 %v574, %v573
            %v588 = vpack.c.b16 %v576, %v575
            %v589 = vpack.c.b16 %v578, %v577
            %v590 = vpack.c.b16 %v580, %v579
            %v591 = vpack.c.b16 %v582, %v581
            %v592 = vpack.c.b16 %v584, %v583
            %601 = vmatprep.subr.bf16.mxu0 0
            %602 = vmatpush1.bf16.msra.mxu0 %v585
            %603 = vmatprep.subr.bf16.mxu0 0
            %604 = vmatpush1.bf16.msra.mxu0 %v586
            %605 = vmatprep.subr.bf16.mxu0 0
            %606 = vmatpush1.bf16.msra.mxu0 %v587
            %607 = vmatprep.subr.bf16.mxu0 0
            %608 = vmatpush1.bf16.msra.mxu0 %v588
            %609 = vmatprep.subr.bf16.mxu0 0
            %610 = vmatpush1.bf16.msra.mxu0 %v589
            %611 = vmatprep.subr.bf16.mxu0 0
            %612 = vmatpush1.bf16.msra.mxu0 %v590
            %613 = vmatprep.subr.bf16.mxu0 0
            %614 = vmatpush1.bf16.msra.mxu0 %v591
            %615 = vmatprep.subr.bf16.mxu0 0
            %616 = vmatpush1.bf16.msra.mxu0 %v592
            %617 = vmatprep.subr.bf16.mxu0 0
            %618 = vmatpush1.bf16.msra.mxu0 0
            %619 = vmatprep.subr.bf16.mxu0 0
            %620 = vmatpush1.bf16.msra.mxu0 0
            %621 = vmatprep.subr.bf16.mxu0 0
            %622 = vmatpush1.bf16.msra.mxu0 0
            %623 = vmatprep.subr.bf16.mxu0 0
            %624 = vmatpush1.bf16.msra.mxu0 0
            %625 = vmatprep.subr.bf16.mxu0 0
            %626 = vmatpush1.bf16.msra.mxu0 0
            %627 = vmatprep.subr.bf16.mxu0 0
            %628 = vmatpush1.bf16.msra.mxu0 0
            %629 = vmatprep.subr.bf16.mxu0 0
            %630 = vmatpush1.bf16.msra.mxu0 0
            %631 = vmatprep.subr.bf16.mxu0 0
            %632 = vmatpush1.bf16.msra.mxu0 0
            %633 = vmatprep.mubr.bf16.mxu0 0
            %634 = vmatmul.mubr.bf16.gmra.mrb[0].mxu0 %v536
            %v635 = vpop.f32.mrb[0].mxu0
            %v636 = vadd.f32 0.0, %v635
            %v637 = vpop.f32.mrb[0].mxu0
            %v638 = vpop.f32.mrb[0].mxu0
            %v639 = vadd.f32 0.0, %v638
            %v640 = vpop.f32.mrb[0].mxu0
            %641 = vdwg.mxu0
            %v642 = vpack.c.bf16 %v639, %v636
            %s643 = smul.addr %s532, 8
            %s644 = scalar_lea.vmem [#allocation3], %s643
            %645 = vst [vmem:[%s644] sm:$0xff] %v642
          $region68: #{tpu_custom_call.1} parent=59 // pred_fallthru
            _
        $region60: #{tpu_custom_call.1} parent=39 // pred_fallthru
          _
        %p646 = scmp.eq.s32.totalorder %s33, 0
        // Predicated region
        $region69: #{tpu_custom_call.1} parent=39 // pred_check
          %p647 = pneg %p646
        $region70: #{tpu_custom_call.1} parent=39 // pred_check_branch
          %649 = sbr.rel (%p647) target = $region72
        $region71: #{tpu_custom_call.1} parent=39 // pred_region
          %650 = vst [vmem:[#allocation4] sm:$0xff] 0.0
          %651 = vst [vmem:[#allocation4 + $0x8] sm:$0xff] 0.0
        $region72: #{tpu_custom_call.1} parent=39 // pred_fallthru
          _
        %v652 = vld [vmem:[#allocation5] sm:$0xf]
        %v653 = vld [vmem:[#allocation5 + $0x4] sm:$0xf]
        %v654 = vld [vmem:[#allocation4] sm:$0xff]
        %v655 = vld [vmem:[#allocation4 + $0x8] sm:$0xff]
        %s656 = sshra.s32 %s399, 4
        %s657 = sand.u32 %s399, 15
        %s658 = smul.addr %s656, 8
        %s659 = scalar_lea.vmem [#allocation3], %s658
        %v660 = vld [vmem:[%s659] sm:$0xff]
        %v663 = vunpack.c.l.b16 %v652
        %v664 = vunpack.c.l.b16 %v653
        %v665 = vpack.c.b16 %v664, %v663
        %vm666 = vcmask 130048
        %v668 = vsel %vm666, %v665, 0
        %670 = vmatprep.subr.bf16.mxu0 0
        %671 = vmatpush1.bf16.msra.mxu0 %v660
        %672 = vmatprep.subr.bf16.mxu0 0
        %673 = vmatpush1.bf16.msra.mxu0 0
        %674 = vmatprep.subr.bf16.mxu0 0
        %675 = vmatpush1.bf16.msra.mxu0 0
        %676 = vmatprep.subr.bf16.mxu0 0
        %677 = vmatpush1.bf16.msra.mxu0 0
        %678 = vmatprep.subr.bf16.mxu0 0
        %679 = vmatpush1.bf16.msra.mxu0 0
        %680 = vmatprep.subr.bf16.mxu0 0
        %681 = vmatpush1.bf16.msra.mxu0 0
        %682 = vmatprep.subr.bf16.mxu0 0
        %683 = vmatpush1.bf16.msra.mxu0 0
        %684 = vmatprep.subr.bf16.mxu0 0
        %685 = vmatpush1.bf16.msra.mxu0 0
        %686 = vmatprep.subr.bf16.mxu0 0
        %687 = vmatpush1.bf16.msra.mxu0 0
        %688 = vmatprep.subr.bf16.mxu0 0
        %689 = vmatpush1.bf16.msra.mxu0 0
        %690 = vmatprep.subr.bf16.mxu0 0
        %691 = vmatpush1.bf16.msra.mxu0 0
        %692 = vmatprep.subr.bf16.mxu0 0
        %693 = vmatpush1.bf16.msra.mxu0 0
        %694 = vmatprep.subr.bf16.mxu0 0
        %695 = vmatpush1.bf16.msra.mxu0 0
        %696 = vmatprep.subr.bf16.mxu0 0
        %697 = vmatpush1.bf16.msra.mxu0 0
        %698 = vmatprep.subr.bf16.mxu0 0
        %699 = vmatpush1.bf16.msra.mxu0 0
        %700 = vmatprep.subr.bf16.mxu0 0
        %701 = vmatpush1.bf16.msra.mxu0 0
        %702 = vmatprep.mubr.bf16.mxu0 0
        %703 = vmatmul.mubr.bf16.gmra.mrb[0].mxu0 %v668
        %v704 = vpop.f32.mrb[0].mxu0
        %v705 = vadd.f32 0.0, %v704
        %v706 = vpop.f32.mrb[0].mxu0
        %v707 = vpop.f32.mrb[0].mxu0
        %v708 = vadd.f32 0.0, %v707
        %v709 = vpop.f32.mrb[0].mxu0
        %710 = vdwg.mxu0
        %v711 = vadd.f32 %v654, %v705
        %v712 = vadd.f32 %v655, %v708
        %713 = vst [vmem:[#allocation4] sm:$0xff] %v711
        %714 = vst [vmem:[#allocation4 + $0x8] sm:$0xff] %v712
        // Predicated region
        $region73: #{tpu_custom_call.1} parent=39 // pred_check
          %p715 = pneg %p646
        $region74: #{tpu_custom_call.1} parent=39 // pred_check_branch
          %717 = sbr.rel (%p715) target = $region76
        $region75: #{tpu_custom_call.1} parent=39 // pred_region
          %v718 = vld [vmem:[#allocation4] sm:$0xff]
          %v719 = vld [vmem:[#allocation4 + $0x8] sm:$0xff]
          %v720 = vld [vmem:[%s394] sm:$0x1]
          %v722 = vlaneseq
          %v723 = vshrl.u32 %v722, 7
          %v724 = vsub.s32 0, %v723
          %v725 = vrot.slane %v720, %v724
          %v727 = vadd.f32 %v718, %v725
          %v728 = vadd.f32 %v719, %v725
          %p729 = scmp.lt.s32.totalorder %s31, 1
          // Predicated region
          $region77: #{tpu_custom_call.1} parent=75 // pred_check
            %p730 = pneg %p729
          $region78: #{tpu_custom_call.1} parent=75 // pred_check_branch
            %732 = sbr.rel (%p730) target = $region80
          $region79: #{tpu_custom_call.1} parent=75 // pred_region
            %v733 = vmax.f32 %v727, 0.0
            %v734 = vmax.f32 %v728, 0.0
            %v735 = vpack.c.bf16 %v734, %v733
            %s736 = sshra.s32 %s400, 4
            %s737 = sand.u32 %s400, 15
            %s738 = smul.addr %s736, 8
            %s739 = scalar_lea.vmem [#allocation2], %s738
            %740 = vst [vmem:[%s739] sm:$0xff] %v735
          $region80: #{tpu_custom_call.1} parent=75 // pred_fallthru
            _
          %p741 = scmp.eq.s32.totalorder %s31, 1
          // Predicated region
          $region81: #{tpu_custom_call.1} parent=75 // pred_check
            %p742 = pneg %p741
          $region82: #{tpu_custom_call.1} parent=75 // pred_check_branch
            %744 = sbr.rel (%p742) target = $region84
          $region83: #{tpu_custom_call.1} parent=75 // pred_region
            %745 = vst [vmem:[%s381] sm:$0xff] %v727
            %746 = vst [vmem:[%s381 + $0x8] sm:$0xff] %v728
          $region84: #{tpu_custom_call.1} parent=75 // pred_fallthru
            _
        $region76: #{tpu_custom_call.1} parent=39 // pred_fallthru
          _
        %s747 = sand.u32 %s200, 1
        %s748 = scalar_lea.sflag [#allocation7], %s747
        %s749 = sand.u32 %s200, 1
        %s750 = smul.addr %s749, 16
        %s751 = scalar_lea.vmem [#allocation13], %s750
        // Predicated region
        $region85: #{tpu_custom_call.1} parent=39 // pred_check
          %p752 = pneg %p210
        $region86: #{tpu_custom_call.1} parent=39 // pred_check_branch
          %754 = sbr.rel (%p752) target = $region88
        $region87: #{tpu_custom_call.1} parent=39 // pred_region
          %p755 = scmp.eq.s32.totalorder %s31, 1
          %s756 = scalar_select %p755, %s32, 0
          %s757 = smul.u32 2, %s756
          %s759 = ssub.s32 256, 256
          %760 = vsyncadd %s748, %s759
          %s761 = smul.addr %s757, 128
          %s762 = scalar_lea.hbm %s5, %s761
          %s763 = sshll.u32 %s751, 4
          %s764 = int_to_ptr.vmem [resolvable:$true] %s763
          %769 = dma.vmem_to_hbm [thread:$0]  %s764, 256, %s762, %s748, 128, 128, 8
        $region88: #{tpu_custom_call.1} parent=39 // pred_fallthru
          _
      $region40: #{tpu_custom_call.1} parent=5 // pred_fallthru
        _
      %p770 = scmp.le.s32.totalorder 2, %s21
      // Predicated region
      $region89: #{tpu_custom_call.1} parent=5 // pred_check
        %p771 = pneg %p770
      $region90: #{tpu_custom_call.1} parent=5 // pred_check_branch
        %773 = sbr.rel (%p771) target = $region92
      $region91: #{tpu_custom_call.1} parent=5 // pred_region
        %s774 = ssub.s32 %s21, 2
        // Predicated region
        $region93: #{tpu_custom_call.1} parent=91 // pred_check
          %p775 = pneg %p216
        $region94: #{tpu_custom_call.1} parent=91 // pred_check_branch
          %777 = sbr.rel (%p775) target = $region96
        $region95: #{tpu_custom_call.1} parent=91 // pred_region
          %s778 = sand.u32 %s201, 1
          %s779 = scalar_lea.sflag [#allocation7], %s778
          %s780 = sand.u32 %s201, 1
          %s781 = smul.addr %s780, 16
          %s782 = scalar_lea.vmem [#allocation13], %s781
          %783 = dma.done %s779, 256
        $region96: #{tpu_custom_call.1} parent=91 // pred_fallthru
          _
      $region92: #{tpu_custom_call.1} parent=5 // pred_fallthru
        _
    $region6: #{tpu_custom_call.1} parent=1 // loop_footer
      %s25 = sadd.s32 1, %s21
    $region7: #{tpu_custom_call.1} parent=1 // loop_footer_branch
      %20 = sbr.rel target = $region3
    $region8: #{tpu_custom_call.1} parent=1 // loop_exit
      _
    %784 = vsyncpa [#allocation6], 1
    %s785 = scalar_lea.sflag [#allocation6], 1
    %786 = vsyncpa %s785, 1
    %787 = vsyncpa [#allocation9], 1
    %s788 = scalar_lea.sflag [#allocation9], 1
    %789 = vsyncpa %s788, 1
    %790 = vsyncpa [#allocation12], 1
    %s791 = scalar_lea.sflag [#allocation12], 1
    %792 = vsyncpa %s791, 1
    %793 = vsyncpa [#allocation7], 1
    %s794 = scalar_lea.sflag [#allocation7], 1
    %795 = vsyncpa %s794, 1

</llo_original>
